<compile_context>
chip_gen: v7x
topology: tpu7x:2x2x1
jax: 0.10.0
libtpu: 0.0.40
codegen_flags: <defaults>
</compile_context>

<pallas_src>
import functools

import jax
import jax.numpy as jnp
from jax import lax
from jax.experimental import pallas as pl
from jax.experimental.pallas import tpu as pltpu

EPS = 1e-12  # F.normalize default eps


# --------------------------------------------------------------------------
# Fused kernel: (folded patch-embed + local proj) -> L2 norm -> VLAD accumulate
# --------------------------------------------------------------------------

def _fused_feature_vlad_kernel(p_ref, wc_ref, bc_ref, ct_ref, csq_ref,
                               o_ref, acc_vlad, acc_s, *, alpha):
    t = pl.program_id(1)

    @pl.when(t == 0)
    def _():
        acc_vlad[...] = jnp.zeros_like(acc_vlad)
        acc_s[...] = jnp.zeros_like(acc_s)

    # --- folded (linear backbone stand-in @ local_proj): one bf16 matmul ---
    local = jnp.dot(p_ref[0], wc_ref[...],
                    preferred_element_type=jnp.float32) + bc_ref[...]      # (Nt, D)

    # --- per-token L2 normalize (F.normalize eps semantics) -----------------
    sq = jnp.sum(local * local, axis=-1, keepdims=True)                    # (Nt, 1)
    inv = lax.rsqrt(jnp.maximum(sq, EPS * EPS))                            # EUP
    local = local * inv
    x_sq = sq * (inv * inv)        # exact ||x||^2 after normalization (≈ 1)

    # --- soft assignment: softmax(-alpha * ||x - c||) -----------------------
    xc = jnp.dot(local, ct_ref[...], preferred_element_type=jnp.float32)   # (Nt, K)
    d2 = x_sq + csq_ref[...] - 2.0 * xc
    dist = jnp.sqrt(jnp.maximum(d2, 0.0))
    logits = -alpha * dist
    logits = logits - jnp.max(logits, axis=-1, keepdims=True)
    e = jnp.exp(logits)
    a = e * pl.reciprocal(jnp.sum(e, axis=-1, keepdims=True), approx=True)  # (Nt, K)

    # --- accumulate VLAD sums in transposed (D, K) layout --------------------
    # local^T a contracted over the token axis (MXU, f32 acc), no relayouts.
    acc_vlad[...] += lax.dot_general(local, a, (((0,), (0,)), ((), ())),
                                     preferred_element_type=jnp.float32)    # (D, K)
    acc_s[...] += jnp.sum(a, axis=0, keepdims=True)                          # (1, K)

    # --- finalize on the last token tile: residual + global L2 normalize ----
    @pl.when(t == pl.num_programs(1) - 1)
    def _():
        vlad_t = acc_vlad[...] - ct_ref[...] * acc_s[...]                    # (D, K)
        sqk = jnp.sum(vlad_t * vlad_t, axis=-1, keepdims=True)               # (D, 1)
        total = jnp.sum(sqk, axis=0, keepdims=True)                          # (1, 1)
        o_ref[0] = vlad_t * lax.rsqrt(jnp.maximum(total, EPS * EPS))


def fused_local_vlad(patches_bf16, w_comb, b_comb, c_t, c_sq, alpha, n_tile):
    B, N, P = patches_bf16.shape
    D, K = c_t.shape
    nt = N // n_tile

    flops = 2 * B * N * (P * D + 2 * D * K)
    transcendentals = B * N * (K + 2)
    bytes_accessed = (patches_bf16.size * 2 + w_comb.size * 2
                      + (b_comb.size + c_t.size + c_sq.size) * 4
                      + B * K * D * 4)

    return pl.pallas_call(
        functools.partial(_fused_feature_vlad_kernel, alpha=float(alpha)),
        out_shape=jax.ShapeDtypeStruct((B, D, K), jnp.float32),
        grid=(B, nt),
        in_specs=[
            pl.BlockSpec((1, n_tile, P), lambda b, t: (b, t, 0)),
            pl.BlockSpec((P, D), lambda b, t: (0, 0)),
            pl.BlockSpec((1, D), lambda b, t: (0, 0)),
            pl.BlockSpec((D, K), lambda b, t: (0, 0)),
            pl.BlockSpec((1, K), lambda b, t: (0, 0)),
        ],
        out_specs=pl.BlockSpec((1, D, K), lambda b, t: (b, 0, 0)),
        scratch_shapes=[
            pltpu.VMEM((D, K), jnp.float32),   # local^T A accumulator
            pltpu.VMEM((1, K), jnp.float32),   # per-cluster assignment mass
        ],
        compiler_params=pltpu.CompilerParams(
            # VMEM working set is a few MiB after the fold; default scoped
            # limits are fine on v5e/v6e/v7x, so no explicit limit requested.
            dimension_semantics=("parallel", "arbitrary"),
        ),
        cost_estimate=pl.CostEstimate(
            flops=int(flops),
            transcendentals=int(transcendentals),
            bytes_accessed=int(bytes_accessed),
        ),
    )(patches_bf16, w_comb, b_comb, c_t, c_sq)


# --------------------------------------------------------------------------
# Fused head kernel: final_proj + classifier (bf16 MXU, lane-dense padded out)
# --------------------------------------------------------------------------

def _head_kernel(v_ref, wfp_ref, bfp_ref, wcls_ref, bcls_ref,
                 feat_ref, logit_ref):
    feats = (jnp.dot(v_ref[...], wfp_ref[...],
                     preferred_element_type=jnp.float32) + bfp_ref[...])
    feat_ref[...] = feats
    logit_ref[...] = (jnp.dot(feats.astype(jnp.bfloat16), wcls_ref[...],
                              preferred_element_type=jnp.float32)
                      + bcls_ref[...])


def head_pallas(vlad_flat_bf16, w_fp, b_fp, w_cls_pad, b_cls_pad):
    B, KD = vlad_flat_bf16.shape
    F = w_fp.shape[1]
    Cp = w_cls_pad.shape[1]
    return pl.pallas_call(
        _head_kernel,
        out_shape=(jax.ShapeDtypeStruct((B, F), jnp.float32),
                   jax.ShapeDtypeStruct((B, Cp), jnp.float32)),
        in_specs=[
            pl.BlockSpec((B, KD), lambda: (0, 0)),
            pl.BlockSpec((KD, F), lambda: (0, 0)),
            pl.BlockSpec((1, F), lambda: (0, 0)),
            pl.BlockSpec((F, Cp), lambda: (0, 0)),
            pl.BlockSpec((1, Cp), lambda: (0, 0)),
        ],
        out_specs=(pl.BlockSpec((B, F), lambda: (0, 0)),
                   pl.BlockSpec((B, Cp), lambda: (0, 0))),
    )(vlad_flat_bf16, w_fp, b_fp, w_cls_pad, b_cls_pad)


# --------------------------------------------------------------------------
# Glue (plain JAX): parameter setup / folding, patch extraction, reshapes
# --------------------------------------------------------------------------

def extract_patches_nchw(x, patch):
    """x: (B, C, H, W) NCHW -> (B, num_tokens, C*patch*patch)."""
    B, C, H, W = x.shape
    Hp, Wp = H // patch, W // patch
    x = x.reshape(B, C, Hp, patch, Wp, patch)
    x = x.transpose(0, 2, 4, 1, 3, 5)                       # (B, Hp, Wp, C, ph, pw)
    return x.reshape(B, Hp * Wp, C * patch * patch)


def _pick_n_tile(n):
    # Prefer large token tiles (amortize per-grid-step overhead); minimum 16
    # so bf16 sublane packing never forces a relayout.
    for cand in (2048, 1024, 512, 256, 128, 64, 32, 16):
        if n % cand == 0:
            return cand
    return n


class HOWVLADPallas:
    """Pallas re-implementation of HOWVLADWrapper (eval-mode forward)."""

    def __init__(self, num_classes, *, in_channels=3, patch=8,
                 backbone_dim=2048, local_dim=32, num_clusters=16,
                 feat_dim=2048, alpha=100.0, key=None):
        if key is None:
            key = jax.random.PRNGKey(0)
        ks = jax.random.split(key, 8)
        self.patch = patch
        self.alpha = float(alpha)
        self.num_classes = num_classes
        P = in_channels * patch * patch
        D = local_dim
        K = num_clusters

        # backbone stand-in (strided patch-embedding conv as a matmul), f32 init
        # TODO(synk): torchvision's pretrained ResNet-50 has no compact Pallas
        # equivalent; this linear patch embedding preserves the downstream
        # (B, tokens, backbone_dim) -> local_proj -> VLAD -> head interface.
        w_bb = 0.02 * jax.random.normal(ks[0], (P, backbone_dim), jnp.float32)
        b_bb = jnp.zeros((1, backbone_dim), jnp.float32)

        # local_proj: Conv2d(backbone_dim, local_dim, kernel_size=1) + bias
        w_lp = 0.02 * jax.random.normal(ks[1], (backbone_dim, D), jnp.float32)
        b_lp = 0.01 * jax.random.normal(ks[2], (1, D), jnp.float32)

        # Fold the two linear layers (exact while the backbone stand-in is linear).
        self.w_comb = (w_bb @ w_lp).astype(jnp.bfloat16)                 # (P, D)
        self.b_comb = (b_bb @ w_lp + b_lp).astype(jnp.float32)          # (1, D)

        # VLAD centroids (torch.rand -> uniform [0, 1)); host-precomputed
        # transposed centroids and squared norms for the kernel.
        centroids = jax.random.uniform(ks[3], (K, D), jnp.float32)
        self.centroids = centroids
        self.c_t = centroids.T.copy()                                   # (D, K)
        self.c_sq = jnp.sum(centroids * centroids, axis=1)[None, :]     # (1, K)

        # final_proj: Linear(K*D, feat_dim).  The kernel emits VLAD in (D, K)
        # layout, so permute W_fp rows to match the d-major flatten order.
        pooled_dim = K * D
        w_fp = 0.02 * jax.random.normal(ks[4], (pooled_dim, feat_dim), jnp.float32)
        w_fp_perm = w_fp.reshape(K, D, feat_dim).transpose(1, 0, 2).reshape(D * K, feat_dim)
        self.w_fp = w_fp_perm.astype(jnp.bfloat16)
        self.b_fp = 0.01 * jax.random.normal(ks[5], (1, feat_dim), jnp.float32)

        # classifier: Linear(feat_dim, num_classes), padded to 128 lanes, bf16
        cpad = ((num_classes + 127) // 128) * 128
        w_cls = 0.02 * jax.random.normal(ks[6], (feat_dim, num_classes), jnp.float32)
        b_cls = 0.01 * jax.random.normal(ks[7], (1, num_classes), jnp.float32)
        self.w_cls = (jnp.zeros((feat_dim, cpad), jnp.float32)
                      .at[:, :num_classes].set(w_cls)).astype(jnp.bfloat16)
        self.b_cls = jnp.zeros((1, cpad), jnp.float32).at[:, :num_classes].set(b_cls)

    # -- internals ---------------------------------------------------------
    def _forward_impl(self, x):
        # x: (B, C, H, W) NCHW image
        patches = extract_patches_nchw(x, self.patch).astype(jnp.bfloat16)  # (B, N, P)
        n_tile = _pick_n_tile(patches.shape[1])
        vlad_t = fused_local_vlad(patches, self.w_comb, self.b_comb,
                                  self.c_t, self.c_sq, self.alpha, n_tile)   # (B, D, K)
        B, D, K = vlad_t.shape
        # Free row-major reshape; W_fp rows were permuted to match this order.
        vlad_flat = vlad_t.reshape(B, D * K).astype(jnp.bfloat16)
        features, logits_pad = head_pallas(vlad_flat, self.w_fp, self.b_fp,
                                           self.w_cls, self.b_cls)
        logits = logits_pad[:, :self.num_classes]
        return features, logits

    # -- public API (mirrors the PyTorch module) ---------------------------
    def extract_features(self, x):
        features, _ = self._forward_impl(x)
        return features

    def __call__(self, x, targets=None):
        """Eval-mode forward: returns (None, logits), like the PyTorch module."""
        _, logits = self._forward_impl(x)
        return None, logits

    def extract_global_descriptor(self, x):
        f, _ = self._forward_impl(x)
        n = jnp.sqrt(jnp.sum(f * f, axis=1, keepdims=True))
        return f / jnp.maximum(n, EPS)


# --------------------------------------------------------------------------
# Demo
# --------------------------------------------------------------------------

if __name__ == "__main__":
    key = jax.random.PRNGKey(0)
    model_key, data_key = jax.random.split(key)

    # Small shapes: B=2 RGB images of 32x32; stand-in backbone stride 8 -> 16 tokens.
    B, C, H, W = 2, 3, 32, 32
    model = HOWVLADPallas(
        num_classes=10,
        in_channels=C,
        patch=8,
        backbone_dim=256,
        local_dim=32,
        num_clusters=16,
        feat_dim=128,
        alpha=100.0,
        key=model_key,
    )

    x = jax.random.normal(data_key, (B, C, H, W), dtype=jnp.float32)

    _, logits = model(x)
    logits = jax.block_until_ready(logits)
    assert logits.shape == (B, 10) and logits.dtype == jnp.float32

    desc = jax.block_until_ready(model.extract_global_descriptor(x))
    assert desc.shape == (B, 128)

    print("KERNEL_OK")
</pallas_src>

<mosaic_0001>
module attributes {stable_mosaic.version = 11 : i64} {
  func.func @_fused_feature_vlad_kernel(%arg0: i32, %arg1: i32, %arg2: memref<1x16x192xbf16, #tpu.memory_space<vmem>>, %arg3: memref<192x32xbf16, #tpu.memory_space<vmem>>, %arg4: memref<1x32xf32, #tpu.memory_space<vmem>>, %arg5: memref<32x16xf32, #tpu.memory_space<vmem>>, %arg6: memref<1x16xf32, #tpu.memory_space<vmem>>, %arg7: memref<1x32x16xf32, #tpu.memory_space<vmem>>, %arg8: memref<32x16xf32, #tpu.memory_space<vmem>>, %arg9: memref<1x16xf32, #tpu.memory_space<vmem>>) attributes {dimension_semantics = [#tpu.dimension_semantics<parallel>, #tpu.dimension_semantics<arbitrary>], iteration_bounds = array<i64: 2, 1>, scalar_prefetch = 0 : i64, scratch_operands = 2 : i64, tpu.core_type = #tpu.core_type<tc>, window_params = [{transform_indices = @transform_0, window_bounds = array<i64: 1, 16, 192>}, {pipeline_mode = #tpu.pipeline_mode<synchronous>, transform_indices = @transform_1, window_bounds = array<i64: 192, 32>}, {pipeline_mode = #tpu.pipeline_mode<synchronous>, transform_indices = @transform_2, window_bounds = array<i64: 1, 32>}, {pipeline_mode = #tpu.pipeline_mode<synchronous>, transform_indices = @transform_3, window_bounds = array<i64: 32, 16>}, {pipeline_mode = #tpu.pipeline_mode<synchronous>, transform_indices = @transform_4, window_bounds = array<i64: 1, 16>}, {transform_indices = @transform_5, window_bounds = array<i64: 1, 32, 16>}]} {
    %c0_i32 = arith.constant 0 : i32
    %0 = arith.cmpi eq, %arg1, %c0_i32 : i32
    %1 = arith.extui %0 : i1 to i32
    %c0_i32_0 = arith.constant 0 : i32
    %2 = arith.cmpi ne, %1, %c0_i32_0 : i32
    scf.if %2 {
      %cst_31 = arith.constant 0.000000e+00 : f32
      %56 = vector.broadcast %cst_31 : f32 to vector<32x16xf32>
      %c0_32 = arith.constant 0 : index
      %c0_33 = arith.constant 0 : index
      %57 = vector.load %arg8[%c0_32, %c0_33] : memref<32x16xf32, #tpu.memory_space<vmem>>, vector<32x16xf32>
      tpu.vector_store %arg8[%c0_32, %c0_33], %56 {strides = array<i32>} : memref<32x16xf32, #tpu.memory_space<vmem>>, vector<32x16xf32>,
      %cst_34 = arith.constant 0.000000e+00 : f32
      %58 = vector.broadcast %cst_34 : f32 to vector<1x16xf32>
      %c0_35 = arith.constant 0 : index
      %c0_36 = arith.constant 0 : index
      %59 = vector.load %arg9[%c0_35, %c0_36] : memref<1x16xf32, #tpu.memory_space<vmem>>, vector<1x16xf32>
      tpu.vector_store %arg9[%c0_35, %c0_36], %58 {strides = array<i32>} : memref<1x16xf32, #tpu.memory_space<vmem>>, vector<1x16xf32>,
    } else {
    }
    %c0 = arith.constant 0 : index
    %c0_1 = arith.constant 0 : index
    %c0_2 = arith.constant 0 : index
    %3 = vector.load %arg2[%c0, %c0_1, %c0_2] : memref<1x16x192xbf16, #tpu.memory_space<vmem>>, vector<1x16x192xbf16>
    %4 = vector.shape_cast %3 : vector<1x16x192xbf16> to vector<16x192xbf16>
    %c0_3 = arith.constant 0 : index
    %c0_4 = arith.constant 0 : index
    %5 = vector.load %arg3[%c0_3, %c0_4] : memref<192x32xbf16, #tpu.memory_space<vmem>>, vector<192x32xbf16>
    %cst = arith.constant dense<0.000000e+00> : vector<16x32xf32>
    %6 = tpu.matmul %4, %5, %cst {dimension_numbers = #tpu.dot_dimension_numbers<[1], [0], [0], [1], [0, 0, 1, 1], [], []>} : vector<16x192xbf16>, vector<192x32xbf16>, vector<16x32xf32> -> vector<16x32xf32>
    %c0_5 = arith.constant 0 : index
    %c0_6 = arith.constant 0 : index
    %7 = vector.load %arg4[%c0_5, %c0_6] : memref<1x32xf32, #tpu.memory_space<vmem>>, vector<1x32xf32>
    %8 = vector.broadcast %7 : vector<1x32xf32> to vector<16x32xf32>
    %9 = arith.addf %6, %8 : vector<16x32xf32>
    %10 = arith.mulf %9, %9 : vector<16x32xf32>
    %cst_7 = arith.constant dense<0.000000e+00> : vector<16xf32>
    %11 = vector.multi_reduction <add>, %10, %cst_7 [1] : vector<16x32xf32> to vector<16xf32>
    %12 = vector.shape_cast %11 : vector<16xf32> to vector<16x1xf32>
    %cst_8 = arith.constant 1.000000e-24 : f32
    %13 = vector.broadcast %cst_8 : f32 to vector<16x1xf32>
    %14 = arith.maximumf %12, %13 : vector<16x1xf32>
    %15 = math.rsqrt %14 : vector<16x1xf32>
    %16 = vector.broadcast %15 : vector<16x1xf32> to vector<16x32xf32>
    %17 = arith.mulf %9, %16 : vector<16x32xf32>
    %18 = arith.mulf %15, %15 : vector<16x1xf32>
    %19 = arith.mulf %12, %18 : vector<16x1xf32>
    %c0_9 = arith.constant 0 : index
    %c0_10 = arith.constant 0 : index
    %20 = vector.load %arg5[%c0_9, %c0_10] : memref<32x16xf32, #tpu.memory_space<vmem>>, vector<32x16xf32>
    %cst_11 = arith.constant dense<0.000000e+00> : vector<16x16xf32>
    %21 = tpu.matmul %17, %20, %cst_11 {dimension_numbers = #tpu.dot_dimension_numbers<[1], [0], [0], [1], [0, 0, 1, 1], [], []>} : vector<16x32xf32>, vector<32x16xf32>, vector<16x16xf32> -> vector<16x16xf32>
    %c0_12 = arith.constant 0 : index
    %c0_13 = arith.constant 0 : index
    %22 = vector.load %arg6[%c0_12, %c0_13] : memref<1x16xf32, #tpu.memory_space<vmem>>, vector<1x16xf32>
    %23 = vector.broadcast %19 : vector<16x1xf32> to vector<16x16xf32>
    %24 = vector.broadcast %22 : vector<1x16xf32> to vector<16x16xf32>
    %25 = arith.addf %23, %24 : vector<16x16xf32>
    %cst_14 = arith.constant 2.000000e+00 : f32
    %26 = vector.broadcast %cst_14 : f32 to vector<16x16xf32>
    %27 = arith.mulf %26, %21 : vector<16x16xf32>
    %28 = arith.subf %25, %27 : vector<16x16xf32>
    %cst_15 = arith.constant 0.000000e+00 : f32
    %29 = vector.broadcast %cst_15 : f32 to vector<16x16xf32>
    %30 = arith.maximumf %28, %29 : vector<16x16xf32>
    %31 = math.sqrt %30 : vector<16x16xf32>
    %cst_16 = arith.constant -1.000000e+02 : f32
    %32 = vector.broadcast %cst_16 : f32 to vector<16x16xf32>
    %33 = arith.mulf %32, %31 : vector<16x16xf32>
    %cst_17 = arith.constant dense<0xFF800000> : vector<16xf32>
    %34 = vector.multi_reduction <maximumf>, %33, %cst_17 [1] : vector<16x16xf32> to vector<16xf32>
    %35 = vector.shape_cast %34 : vector<16xf32> to vector<16x1xf32>
    %36 = vector.broadcast %35 : vector<16x1xf32> to vector<16x16xf32>
    %37 = arith.subf %33, %36 : vector<16x16xf32>
    %38 = math.exp %37 : vector<16x16xf32>
    %cst_18 = arith.constant dense<0.000000e+00> : vector<16xf32>
    %39 = vector.multi_reduction <add>, %38, %cst_18 [1] : vector<16x16xf32> to vector<16xf32>
    %40 = vector.shape_cast %39 : vector<16xf32> to vector<16x1xf32>
    %41 = tpu.reciprocal %40 {approx = true} : vector<16x1xf32> -> vector<16x1xf32>
    %42 = vector.broadcast %41 : vector<16x1xf32> to vector<16x16xf32>
    %43 = arith.mulf %38, %42 : vector<16x16xf32>
    %c0_19 = arith.constant 0 : index
    %c0_20 = arith.constant 0 : index
    %44 = vector.load %arg8[%c0_19, %c0_20] : memref<32x16xf32, #tpu.memory_space<vmem>>, vector<32x16xf32>
    %cst_21 = arith.constant dense<0.000000e+00> : vector<32x16xf32>
    %45 = tpu.matmul %17, %43, %cst_21 {dimension_numbers = #tpu.dot_dimension_numbers<[0], [0], [1], [1], [0, 1, 1, 1], [], []>} : vector<16x32xf32>, vector<16x16xf32>, vector<32x16xf32> -> vector<32x16xf32>
    %46 = arith.addf %44, %45 : vector<32x16xf32>
    %c0_22 = arith.constant 0 : index
    %c0_23 = arith.constant 0 : index
    %47 = vector.load %arg8[%c0_22, %c0_23] : memref<32x16xf32, #tpu.memory_space<vmem>>, vector<32x16xf32>
    tpu.vector_store %arg8[%c0_22, %c0_23], %46 {strides = array<i32>} : memref<32x16xf32, #tpu.memory_space<vmem>>, vector<32x16xf32>,
    %c0_24 = arith.constant 0 : index
    %c0_25 = arith.constant 0 : index
    %48 = vector.load %arg9[%c0_24, %c0_25] : memref<1x16xf32, #tpu.memory_space<vmem>>, vector<1x16xf32>
    %cst_26 = arith.constant dense<0.000000e+00> : vector<16xf32>
    %49 = vector.multi_reduction <add>, %43, %cst_26 [0] : vector<16x16xf32> to vector<16xf32>
    %50 = vector.shape_cast %49 : vector<16xf32> to vector<1x16xf32>
    %51 = arith.addf %48, %50 : vector<1x16xf32>
    %c0_27 = arith.constant 0 : index
    %c0_28 = arith.constant 0 : index
    %52 = vector.load %arg9[%c0_27, %c0_28] : memref<1x16xf32, #tpu.memory_space<vmem>>, vector<1x16xf32>
    tpu.vector_store %arg9[%c0_27, %c0_28], %51 {strides = array<i32>} : memref<1x16xf32, #tpu.memory_space<vmem>>, vector<1x16xf32>,
    %c0_i32_29 = arith.constant 0 : i32
    %53 = arith.cmpi eq, %arg1, %c0_i32_29 : i32
    %54 = arith.extui %53 : i1 to i32
    %c0_i32_30 = arith.constant 0 : i32
    %55 = arith.cmpi ne, %54, %c0_i32_30 : i32
    scf.if %55 {
      %c0_31 = arith.constant 0 : index
      %c0_32 = arith.constant 0 : index
      %56 = vector.load %arg8[%c0_31, %c0_32] : memref<32x16xf32, #tpu.memory_space<vmem>>, vector<32x16xf32>
      %c0_33 = arith.constant 0 : index
      %c0_34 = arith.constant 0 : index
      %57 = vector.load %arg5[%c0_33, %c0_34] : memref<32x16xf32, #tpu.memory_space<vmem>>, vector<32x16xf32>
      %c0_35 = arith.constant 0 : index
      %c0_36 = arith.constant 0 : index
      %58 = vector.load %arg9[%c0_35, %c0_36] : memref<1x16xf32, #tpu.memory_space<vmem>>, vector<1x16xf32>
      %59 = vector.broadcast %58 : vector<1x16xf32> to vector<32x16xf32>
      %60 = arith.mulf %57, %59 : vector<32x16xf32>
      %61 = arith.subf %56, %60 : vector<32x16xf32>
      %62 = arith.mulf %61, %61 : vector<32x16xf32>
      %cst_37 = arith.constant dense<0.000000e+00> : vector<32xf32>
      %63 = vector.multi_reduction <add>, %62, %cst_37 [1] : vector<32x16xf32> to vector<32xf32>
      %64 = vector.shape_cast %63 : vector<32xf32> to vector<32x1xf32>
      %cst_38 = arith.constant dense<0.000000e+00> : vector<1xf32>
      %65 = vector.multi_reduction <add>, %64, %cst_38 [0] : vector<32x1xf32> to vector<1xf32>
      %66 = vector.shape_cast %65 : vector<1xf32> to vector<1x1xf32>
      %cst_39 = arith.constant 1.000000e-24 : f32
      %67 = vector.broadcast %cst_39 : f32 to vector<1x1xf32>
      %68 = arith.maximumf %66, %67 : vector<1x1xf32>
      %69 = math.rsqrt %68 : vector<1x1xf32>
      %70 = vector.broadcast %69 : vector<1x1xf32> to vector<32x16xf32>
      %71 = arith.mulf %61, %70 : vector<32x16xf32>
      %c0_40 = arith.constant 0 : index
      %c0_41 = arith.constant 0 : index
      %c0_42 = arith.constant 0 : index
      %72 = vector.load %arg7[%c0_40, %c0_41, %c0_42] : memref<1x32x16xf32, #tpu.memory_space<vmem>>, vector<1x32x16xf32>
      %73 = vector.shape_cast %72 : vector<1x32x16xf32> to vector<32x16xf32>
      %74 = vector.shape_cast %71 : vector<32x16xf32> to vector<1x32x16xf32>
      tpu.vector_store %arg7[%c0_40, %c0_41, %c0_42], %74 {strides = array<i32>} : memref<1x32x16xf32, #tpu.memory_space<vmem>>, vector<1x32x16xf32>,
    } else {
    }
    return
  }
  func.func @transform_0(%arg0: i32, %arg1: i32) -> (i32, i32, i32) {
    %c0_i32 = arith.constant 0 : i32
    %c0_i32_0 = arith.constant 0 : i32
    return %arg0, %arg1, %c0_i32 : i32, i32, i32
  }
  func.func @transform_1(%arg0: i32, %arg1: i32) -> (i32, i32) {
    %c0_i32 = arith.constant 0 : i32
    %c0_i32_0 = arith.constant 0 : i32
    %c0_i32_1 = arith.constant 0 : i32
    return %c0_i32, %c0_i32_0 : i32, i32
  }
  func.func @transform_2(%arg0: i32, %arg1: i32) -> (i32, i32) {
    %c0_i32 = arith.constant 0 : i32
    %c0_i32_0 = arith.constant 0 : i32
    %c0_i32_1 = arith.constant 0 : i32
    return %c0_i32, %c0_i32_0 : i32, i32
  }
  func.func @transform_3(%arg0: i32, %arg1: i32) -> (i32, i32) {
    %c0_i32 = arith.constant 0 : i32
    %c0_i32_0 = arith.constant 0 : i32
    %c0_i32_1 = arith.constant 0 : i32
    return %c0_i32, %c0_i32_0 : i32, i32
  }
  func.func @transform_4(%arg0: i32, %arg1: i32) -> (i32, i32) {
    %c0_i32 = arith.constant 0 : i32
    %c0_i32_0 = arith.constant 0 : i32
    %c0_i32_1 = arith.constant 0 : i32
    return %c0_i32, %c0_i32_0 : i32, i32
  }
  func.func @transform_5(%arg0: i32, %arg1: i32) -> (i32, i32, i32) {
    %c0_i32 = arith.constant 0 : i32
    %c0_i32_0 = arith.constant 0 : i32
    %c0_i32_1 = arith.constant 0 : i32
    return %arg0, %c0_i32, %c0_i32_0 : i32, i32, i32
  }
}

</mosaic_0001>

<llo_original>
// kernel: tpu_custom_call.1
$region0: #{tpu_custom_call.1}
  #allocation0 [shape = 'u32[]', space=smem, size = 0x4, offset = 0x4, fixed_abs, tag = 'smem constant byte address 0x4 - core index']
  #allocation1 [shape = 'u32[144,128]{1,0:T(1,128)}', space=vmem, size = 0x12000, scoped, tag = 'internal scratch']
  #allocation2 [shape = 'f32[32,16]{1,0:T(8,128)}', space=vmem, size = 0x4000, scoped, tag = 'scratch operand']
  #allocation3 [shape = 'f32[1,16]{1,0:T(1,128)}', space=vmem, size = 0x200, scoped, tag = 'scratch operand']
  %s0 = inlined_call_operand.vmem [shape: bf16[2,16,192], index: 0, kind: input, shape index: {}]
  %s1 = inlined_call_operand.vmem [shape: bf16[192,32], index: 1, kind: input, shape index: {}]
  %s2 = inlined_call_operand.vmem [shape: f32[1,32], index: 2, kind: input, shape index: {}]
  %s3 = inlined_call_operand.vmem [shape: f32[32,16], index: 3, kind: input, shape index: {}]
  %s4 = inlined_call_operand.vmem [shape: f32[1,16], index: 4, kind: input, shape index: {}]
  %s5 = inlined_call_operand.vmem [shape: f32[2,32,16], index: 5, kind: output, shape index: {}]
  %s6 = sld [smem:[#allocation0]]
  $region61: #{tpu_custom_call.1} parent=0
    _
  %s8 = ssub.s32 1, %s6
  %s9 = scalar_select 0, %s8, %s6
  loop: start=0, step=1, limit=4
  $region2: #{tpu_custom_call.1} parent=0 // loop_pre_header
    _
  $region3: #{tpu_custom_call.1} parent=0 // loop_header
    %s11 = sphi 0, %s15
    %p12 = scmp.ge.s32.totalorder %s11, 4
    %s18 = sphi 0, %s30
    %s19 = sphi 0, %s26
    %s20 = sphi 0, %s18
    %s21 = sphi 0, %s19
    %s22 = sphi 0, %s20
    %s23 = sphi 0, %s21
    %s35 = sphi 0, %s37
    %s38 = sphi 0, %s35
    %s39 = sphi 0, %s38
    %s55 = sphi 0, %s39
    %s59 = sphi 0, %s59
    %s61 = sphi 0, %s59
    %s62 = sphi 0, %s61
    %s76 = sphi 0, %s62
    %s80 = sphi 0, %s80
    %s82 = sphi 0, %s80
    %s83 = sphi 0, %s82
    %s97 = sphi 0, %s83
    %s101 = sphi 0, %s101
    %s103 = sphi 0, %s101
    %s104 = sphi 0, %s103
    %s118 = sphi 0, %s104
    %s122 = sphi 0, %s122
    %s124 = sphi 0, %s122
    %s125 = sphi 0, %s124
    %s139 = sphi 0, %s125
    %s145 = sphi 0, %s147
    %s148 = sphi 0, %s145
    %s149 = sphi 0, %s148
    %s165 = sphi 0, %s149
  $region4: #{tpu_custom_call.1} parent=0 // loop_header_branch
    %14 = sbr.rel (%p12) target = $region8
  $region5: #{tpu_custom_call.1} parent=0 // loop_body
    %s16 = ssub.s32 %s11, 1
    %s17 = ssub.s32 %s11, 2
    %s24 = sadd.s32 1, %s19
    %p25 = scmp.ge.s32.totalorder %s24, 1
    %s26 = scalar_select %p25, 0, %s24
    %s27 = sadd.s32 1, %s18
    %s28 = scalar_select %p25, %s27, %s18
    %p29 = scmp.ge.s32.totalorder %s28, 2
    %s30 = scalar_select %p29, 0, %s28
    %s31 = ssub.s32 %s18, %s30
    %s32 = ssub.s32 %s19, %s26
    %s33 = sor.u32 %s31, %s32
    %p34 = scmp.eq.s32.totalorder %s33, 0
    %s36 = sadd.s32 %s35, 1
    %s37 = scalar_select %p34, %s35, %s36
    %p40 = pneg %p34
    %p41 = scmp.eq.s32.totalorder %s11, 1
    %p42 = por %p40, %p41
    %p43 = scmp.ne.s32.totalorder %s35, %s38
    %p44 = scmp.eq.s32.totalorder %s11, 0
    %p45 = por %p43, %p44
    %p46 = scmp.ne.s32.totalorder %s35, %s38
    %p47 = scmp.eq.s32.totalorder %s16, 1
    %p48 = por %p46, %p47
    %p49 = scmp.ne.s32.totalorder %s38, %s39
    %p50 = scmp.eq.s32.totalorder %s16, 0
    %p51 = por %p49, %p50
    %p52 = scmp.ne.s32.totalorder %s38, %s39
    %p53 = scmp.eq.s32.totalorder %s17, 1
    %p54 = por %p52, %p53
    %p56 = scmp.ne.s32.totalorder %s39, %s55
    %p57 = scmp.eq.s32.totalorder %s17, 0
    %p58 = por %p56, %p57
    %s60 = sadd.s32 %s59, 1
    %p63 = scmp.eq.s32.totalorder %s11, 1
    %p64 = scmp.ne.s32.totalorder %s59, %s61
    %p65 = scmp.eq.s32.totalorder %s11, 0
    %p66 = por %p64, %p65
    %p67 = scmp.ne.s32.totalorder %s59, %s61
    %p68 = scmp.eq.s32.totalorder %s16, 1
    %p69 = por %p67, %p68
    %p70 = scmp.ne.s32.totalorder %s61, %s62
    %p71 = scmp.eq.s32.totalorder %s16, 0
    %p72 = por %p70, %p71
    %p73 = scmp.ne.s32.totalorder %s61, %s62
    %p74 = scmp.eq.s32.totalorder %s17, 1
    %p75 = por %p73, %p74
    %p77 = scmp.ne.s32.totalorder %s62, %s76
    %p78 = scmp.eq.s32.totalorder %s17, 0
    %p79 = por %p77, %p78
    %s81 = sadd.s32 %s80, 1
    %p84 = scmp.eq.s32.totalorder %s11, 1
    %p85 = scmp.ne.s32.totalorder %s80, %s82
    %p86 = scmp.eq.s32.totalorder %s11, 0
    %p87 = por %p85, %p86
    %p88 = scmp.ne.s32.totalorder %s80, %s82
    %p89 = scmp.eq.s32.totalorder %s16, 1
    %p90 = por %p88, %p89
    %p91 = scmp.ne.s32.totalorder %s82, %s83
    %p92 = scmp.eq.s32.totalorder %s16, 0
    %p93 = por %p91, %p92
    %p94 = scmp.ne.s32.totalorder %s82, %s83
    %p95 = scmp.eq.s32.totalorder %s17, 1
    %p96 = por %p94, %p95
    %p98 = scmp.ne.s32.totalorder %s83, %s97
    %p99 = scmp.eq.s32.totalorder %s17, 0
    %p100 = por %p98, %p99
    %s102 = sadd.s32 %s101, 1
    %p105 = scmp.eq.s32.totalorder %s11, 1
    %p106 = scmp.ne.s32.totalorder %s101, %s103
    %p107 = scmp.eq.s32.totalorder %s11, 0
    %p108 = por %p106, %p107
    %p109 = scmp.ne.s32.totalorder %s101, %s103
    %p110 = scmp.eq.s32.totalorder %s16, 1
    %p111 = por %p109, %p110
    %p112 = scmp.ne.s32.totalorder %s103, %s104
    %p113 = scmp.eq.s32.totalorder %s16, 0
    %p114 = por %p112, %p113
    %p115 = scmp.ne.s32.totalorder %s103, %s104
    %p116 = scmp.eq.s32.totalorder %s17, 1
    %p117 = por %p115, %p116
    %p119 = scmp.ne.s32.totalorder %s104, %s118
    %p120 = scmp.eq.s32.totalorder %s17, 0
    %p121 = por %p119, %p120
    %s123 = sadd.s32 %s122, 1
    %p126 = scmp.eq.s32.totalorder %s11, 1
    %p127 = scmp.ne.s32.totalorder %s122, %s124
    %p128 = scmp.eq.s32.totalorder %s11, 0
    %p129 = por %p127, %p128
    %p130 = scmp.ne.s32.totalorder %s122, %s124
    %p131 = scmp.eq.s32.totalorder %s16, 1
    %p132 = por %p130, %p131
    %p133 = scmp.ne.s32.totalorder %s124, %s125
    %p134 = scmp.eq.s32.totalorder %s16, 0
    %p135 = por %p133, %p134
    %p136 = scmp.ne.s32.totalorder %s124, %s125
    %p137 = scmp.eq.s32.totalorder %s17, 1
    %p138 = por %p136, %p137
    %p140 = scmp.ne.s32.totalorder %s125, %s139
    %p141 = scmp.eq.s32.totalorder %s17, 0
    %p142 = por %p140, %p141
    %s143 = ssub.s32 %s18, %s30
    %p144 = scmp.eq.s32.totalorder %s143, 0
    %s146 = sadd.s32 %s145, 1
    %s147 = scalar_select %p144, %s145, %s146
    %p150 = pneg %p144
    %p151 = scmp.eq.s32.totalorder %s11, 1
    %p152 = por %p150, %p151
    %p153 = scmp.ne.s32.totalorder %s145, %s148
    %p154 = scmp.eq.s32.totalorder %s11, 0
    %p155 = por %p153, %p154
    %p156 = scmp.ne.s32.totalorder %s145, %s148
    %p157 = scmp.eq.s32.totalorder %s16, 1
    %p158 = por %p156, %p157
    %p159 = scmp.ne.s32.totalorder %s148, %s149
    %p160 = scmp.eq.s32.totalorder %s16, 0
    %p161 = por %p159, %p160
    %p162 = scmp.ne.s32.totalorder %s148, %s149
    %p163 = scmp.eq.s32.totalorder %s17, 1
    %p164 = por %p162, %p163
    %p166 = scmp.ne.s32.totalorder %s149, %s165
    %p167 = scmp.eq.s32.totalorder %s17, 0
    %p168 = por %p166, %p167
    %p169 = scmp.le.s32.totalorder 1, %s11
    %p170 = scmp.lt.s32.totalorder %s11, 3
    %p171 = pnand %p169, %p170
    %p172 = pneg %p171
    // Predicated region
    $region9: #{tpu_custom_call.1} parent=5 // pred_check
      _
    $region10: #{tpu_custom_call.1} parent=5 // pred_check_branch
      %174 = sbr.rel (%p171) target = $region12
    $region11: #{tpu_custom_call.1} parent=5 // pred_region
      %s175 = ssub.s32 %s11, 1
      // Predicated region
      $region13: #{tpu_custom_call.1} parent=11 // pred_check
        %p176 = pneg %p72
      $region14: #{tpu_custom_call.1} parent=11 // pred_check_branch
        %178 = sbr.rel (%p176) target = $region16
      $region15: #{tpu_custom_call.1} parent=11 // pred_region
        _
      $region16: #{tpu_custom_call.1} parent=11 // pred_fallthru
        _
      // Predicated region
      $region17: #{tpu_custom_call.1} parent=11 // pred_check
        %p179 = pneg %p93
      $region18: #{tpu_custom_call.1} parent=11 // pred_check_branch
        %181 = sbr.rel (%p179) target = $region20
      $region19: #{tpu_custom_call.1} parent=11 // pred_region
        _
      $region20: #{tpu_custom_call.1} parent=11 // pred_fallthru
        _
      // Predicated region
      $region21: #{tpu_custom_call.1} parent=11 // pred_check
        %p182 = pneg %p114
      $region22: #{tpu_custom_call.1} parent=11 // pred_check_branch
        %184 = sbr.rel (%p182) target = $region24
      $region23: #{tpu_custom_call.1} parent=11 // pred_region
        _
      $region24: #{tpu_custom_call.1} parent=11 // pred_fallthru
        _
      // Predicated region
      $region25: #{tpu_custom_call.1} parent=11 // pred_check
        %p185 = pneg %p135
      $region26: #{tpu_custom_call.1} parent=11 // pred_check_branch
        %187 = sbr.rel (%p185) target = $region28
      $region27: #{tpu_custom_call.1} parent=11 // pred_region
        _
      $region28: #{tpu_custom_call.1} parent=11 // pred_fallthru
        _
    $region12: #{tpu_custom_call.1} parent=5 // pred_fallthru
      _
    %p188 = scmp.lt.s32.totalorder %s11, 2
    // Predicated region
    $region29: #{tpu_custom_call.1} parent=5 // pred_check
      %p189 = pneg %p188
    $region30: #{tpu_custom_call.1} parent=5 // pred_check_branch
      %191 = sbr.rel (%p189) target = $region32
    $region31: #{tpu_custom_call.1} parent=5 // pred_region
      // Predicated region
      $region33: #{tpu_custom_call.1} parent=31 // pred_check
        %p192 = pneg %p45
      $region34: #{tpu_custom_call.1} parent=31 // pred_check_branch
        %194 = sbr.rel (%p192) target = $region36
      $region35: #{tpu_custom_call.1} parent=31 // pred_region
        %s195 = smul.u32 2, %s19
        %p196 = scmp.lt.s32.totalorder %s18, 1
        %s197 = scalar_select %p196, %s18, 1
        %p198 = scmp.lt.s32.totalorder %s195, 1
        %s199 = scalar_select %p198, %s195, 1
        %s200 = smul.addr %s199, 2
        %s201 = smul.addr %s197, 4
        %s202 = sadd.s32 %s200, %s201
        %s203 = smul.addr %s202, 4
        %s204 = scalar_lea.vmem %s0, %s203
        %s205 = smul.u32 2, %s19
      $region36: #{tpu_custom_call.1} parent=31 // pred_fallthru
        _
    $region32: #{tpu_custom_call.1} parent=5 // pred_fallthru
      _
    %p206 = scmp.le.s32.totalorder 1, %s11
    %p207 = scmp.lt.s32.totalorder %s11, 3
    %p208 = pnand %p206, %p207
    %p209 = pneg %p208
    // Predicated region
    $region37: #{tpu_custom_call.1} parent=5 // pred_check
      _
    $region38: #{tpu_custom_call.1} parent=5 // pred_check_branch
      %211 = sbr.rel (%p208) target = $region40
    $region39: #{tpu_custom_call.1} parent=5 // pred_region
      %s212 = ssub.s32 %s11, 1
      %s213 = smul.u32 2, %s21
      %p214 = scmp.lt.s32.totalorder %s20, 1
      %s215 = scalar_select %p214, %s20, 1
      %p216 = scmp.lt.s32.totalorder %s213, 1
      %s217 = scalar_select %p216, %s213, 1
      %s218 = smul.addr %s217, 2
      %s219 = smul.addr %s215, 4
      %s220 = sadd.s32 %s218, %s219
      %s221 = smul.addr %s220, 4
      %s222 = scalar_lea.vmem %s0, %s221
      %p223 = pneg %p51
      %p224 = pneg %p48
      %p225 = pneg %p72
      %p226 = pneg %p69
      %p227 = pneg %p93
      %p228 = pneg %p90
      %p229 = pneg %p114
      %p230 = pneg %p111
      %p231 = pneg %p135
      %p232 = pneg %p132
      %p233 = pneg %p161
      %p234 = pneg %p158
      %p235 = scmp.lt.s32.totalorder %s20, 1
      %s236 = scalar_select %p235, %s20, 1
      %s237 = smul.addr %s236, 4
      %s238 = smul.addr %s237, 8
      %s239 = scalar_lea.vmem %s5, %s238
      %s240 = smul.u32 2, %s21
      %p241 = scmp.lt.s32.totalorder %s20, 1
      %s242 = scalar_select %p241, %s20, 1
      %p243 = scmp.lt.s32.totalorder %s240, 1
      %s244 = scalar_select %p243, %s240, 1
      %s245 = smul.addr %s244, 2
      %s246 = smul.addr %s242, 4
      %s247 = sadd.s32 %s245, %s246
      %s248 = smul.addr %s247, 4
      %s249 = scalar_lea.vmem %s0, %s248
      %s250 = smul.u32 2, %s21
      %p251 = scmp.lt.s32.totalorder %s20, 1
      %s252 = scalar_select %p251, %s20, 1
      %s253 = smul.addr %s252, 4
      %s254 = smul.addr %s253, 8
      %s255 = scalar_lea.vmem %s5, %s254
      %p257 = scmp.eq.s32.totalorder %s21, 0
      // Predicated region
      $region41: #{tpu_custom_call.1} parent=39 // pred_check
        %p258 = pneg %p257
      $region42: #{tpu_custom_call.1} parent=39 // pred_check_branch
        %260 = sbr.rel (%p258) target = $region44
      $region43: #{tpu_custom_call.1} parent=39 // pred_region
        %vm261 = vcmask 130048
        %262 = vst.msk [vmem:[#allocation2] sm:$0xff] %vm261, 0.0
        %263 = vst.msk [vmem:[#allocation2 + $0x8] sm:$0xff] %vm261, 0.0
        %264 = vst.msk [vmem:[#allocation2 + $0x10] sm:$0xff] %vm261, 0.0
        %265 = vst.msk [vmem:[#allocation2 + $0x18] sm:$0xff] %vm261, 0.0
        %vm266 = vcmask 122880
        %267 = vst.msk [vmem:[#allocation3] sm:$0x1] %vm266, 0.0
      $region44: #{tpu_custom_call.1} parent=39 // pred_fallthru
        _
      %v268 = vld [vmem:[%s249] sm:$0xff]
      %v269 = vld [vmem:[%s249 + $0x8] sm:$0xff]
      %v270 = vld [vmem:[%s1] sm:$0xf]
      %v271 = vld [vmem:[%s1 + $0x4] sm:$0xf]
      %v272 = vld [vmem:[%s1 + $0x8] sm:$0xf]
      %v273 = vld [vmem:[%s1 + $0xc] sm:$0xf]
      %v274 = vld [vmem:[%s1 + $0x10] sm:$0xf]
      %v275 = vld [vmem:[%s1 + $0x14] sm:$0xf]
      %v276 = vld [vmem:[%s1 + $0x18] sm:$0xf]
      %v277 = vld [vmem:[%s1 + $0x1c] sm:$0xf]
      %v278 = vld [vmem:[%s1 + $0x20] sm:$0xf]
      %v279 = vld [vmem:[%s1 + $0x24] sm:$0xf]
      %v280 = vld [vmem:[%s1 + $0x28] sm:$0xf]
      %v281 = vld [vmem:[%s1 + $0x2c] sm:$0xf]
      %v282 = vld [vmem:[%s1 + $0x30] sm:$0xf]
      %v283 = vld [vmem:[%s1 + $0x34] sm:$0xf]
      %v284 = vld [vmem:[%s1 + $0x38] sm:$0xf]
      %v285 = vld [vmem:[%s1 + $0x3c] sm:$0xf]
      %v286 = vld [vmem:[%s1 + $0x40] sm:$0xf]
      %v287 = vld [vmem:[%s1 + $0x44] sm:$0xf]
      %v288 = vld [vmem:[%s1 + $0x48] sm:$0xf]
      %v289 = vld [vmem:[%s1 + $0x4c] sm:$0xf]
      %v290 = vld [vmem:[%s1 + $0x50] sm:$0xf]
      %v291 = vld [vmem:[%s1 + $0x54] sm:$0xf]
      %v292 = vld [vmem:[%s1 + $0x58] sm:$0xf]
      %v293 = vld [vmem:[%s1 + $0x5c] sm:$0xf]
      %v294 = vld [vmem:[%s2] sm:$0x1]
      %v296 = vlaneseq
      %v297 = vshrl.u32 %v296, 7
      %v298 = vsub.s32 0, %v297
      %v299 = vrot.slane %v294, %v298
      %v303 = vunpack.c.l.b16 %v268
      %v304 = vunpack.c.h.b16 %v268
      %v305 = vunpack.c.l.b16 %v269
      %v306 = vunpack.c.h.b16 %v269
      %v307 = vpack.c.b16 %v305, %v303
      %v308 = vpack.c.b16 %v306, %v304
      %v334 = vunpack.c.l.b16 %v270
      %v335 = vunpack.c.l.b16 %v271
      %v336 = vunpack.c.l.b16 %v272
      %v337 = vunpack.c.l.b16 %v273
      %v338 = vunpack.c.l.b16 %v274
      %v339 = vunpack.c.l.b16 %v275
      %v340 = vunpack.c.l.b16 %v276
      %v341 = vunpack.c.l.b16 %v277
      %v342 = vunpack.c.l.b16 %v278
      %v343 = vunpack.c.l.b16 %v279
      %v344 = vunpack.c.l.b16 %v280
      %v345 = vunpack.c.l.b16 %v281
      %v346 = vunpack.c.l.b16 %v282
      %v347 = vunpack.c.l.b16 %v283
      %v348 = vunpack.c.l.b16 %v284
      %v349 = vunpack.c.l.b16 %v285
      %v350 = vunpack.c.l.b16 %v286
      %v351 = vunpack.c.l.b16 %v287
      %v352 = vunpack.c.l.b16 %v288
      %v353 = vunpack.c.l.b16 %v289
      %v354 = vunpack.c.l.b16 %v290
      %v355 = vunpack.c.l.b16 %v291
      %v356 = vunpack.c.l.b16 %v292
      %v357 = vunpack.c.l.b16 %v293
      %v358 = vpack.c.b16 %v335, %v334
      %v359 = vpack.c.b16 %v337, %v336
      %v360 = vpack.c.b16 %v339, %v338
      %v361 = vpack.c.b16 %v341, %v340
      %v362 = vpack.c.b16 %v343, %v342
      %v363 = vpack.c.b16 %v345, %v344
      %v364 = vpack.c.b16 %v347, %v346
      %v365 = vpack.c.b16 %v349, %v348
      %v366 = vpack.c.b16 %v351, %v350
      %v367 = vpack.c.b16 %v353, %v352
      %v368 = vpack.c.b16 %v355, %v354
      %v369 = vpack.c.b16 %v357, %v356
      %vm382 = vcmask 523264
      %v384 = vsel %vm382, %v308, 0
      %386 = vmatprep.subr.bf16.mxu0 0
      %387 = vmatpush1.bf16.msra.mxu0 %v358
      %388 = vmatprep.subr.bf16.mxu0 0
      %389 = vmatpush1.bf16.msra.mxu0 %v359
      %390 = vmatprep.subr.bf16.mxu0 0
      %391 = vmatpush1.bf16.msra.mxu0 %v360
      %392 = vmatprep.subr.bf16.mxu0 0
      %393 = vmatpush1.bf16.msra.mxu0 %v361
      %394 = vmatprep.subr.bf16.mxu0 0
      %395 = vmatpush1.bf16.msra.mxu0 %v362
      %396 = vmatprep.subr.bf16.mxu0 0
      %397 = vmatpush1.bf16.msra.mxu0 %v363
      %398 = vmatprep.subr.bf16.mxu0 0
      %399 = vmatpush1.bf16.msra.mxu0 %v364
      %400 = vmatprep.subr.bf16.mxu0 0
      %401 = vmatpush1.bf16.msra.mxu0 %v365
      %402 = vmatprep.subr.bf16.mxu0 0
      %403 = vmatpush1.bf16.msra.mxu0 %v366
      %404 = vmatprep.subr.bf16.mxu0 0
      %405 = vmatpush1.bf16.msra.mxu0 %v367
      %406 = vmatprep.subr.bf16.mxu0 0
      %407 = vmatpush1.bf16.msra.mxu0 %v368
      %408 = vmatprep.subr.bf16.mxu0 0
      %409 = vmatpush1.bf16.msra.mxu0 %v369
      %410 = vmatprep.subr.bf16.mxu0 0
      %411 = vmatpush1.bf16.msra.mxu0 0
      %412 = vmatprep.subr.bf16.mxu0 0
      %413 = vmatpush1.bf16.msra.mxu0 0
      %414 = vmatprep.subr.bf16.mxu0 0
      %415 = vmatpush1.bf16.msra.mxu0 0
      %416 = vmatprep.subr.bf16.mxu0 0
      %417 = vmatpush1.bf16.msra.mxu0 0
      %418 = vmatprep.mubr.bf16.mxu0 %v384
      %419 = vmatmul.mubr.bf16.gmra.mrb[0].mxu0 %v307
      %v420 = vpop.f32.mrb[0].mxu0
      %v421 = vadd.f32 %v299, %v420
      %v422 = vpop.f32.mrb[0].mxu0
      %v423 = vpop.f32.mrb[0].mxu0
      %v424 = vadd.f32 %v299, %v423
      %v425 = vpop.f32.mrb[0].mxu0
      %426 = vdwg.mxu0
      %v427 = vmul.f32 %v421, %v421
      %v428 = vmul.f32 %v424, %v424
      %vm429 = vcmask 261120
      %v430 = vsel %vm429, %v427, 0.0
      %431 = vadd.xlane.f32.xlu0 %v430
      %v432 = vpop.xlane.xlu0 %431
      %v433 = vsel %vm429, %v428, 0.0
      %434 = vadd.xlane.f32.xlu0 %v433
      %v435 = vpop.xlane.xlu0 %434
      %v436 = vmax.f32 %v432, 1e-24
      %v437 = vmax.f32 %v435, 1e-24
      %v438 = vrsqrt.pop %v436
      %v439 = vrsqrt.pop %v437
      %v440 = vmul.f32 %v421, %v438
      %v441 = vmul.f32 %v424, %v439
      %v442 = vmul.f32 %v438, %v438
      %v443 = vmul.f32 %v439, %v439
      %v444 = vmul.f32 %v432, %v442
      %v445 = vmul.f32 %v435, %v443
      %v446 = vld [vmem:[%s3] sm:$0xff]
      %v447 = vld [vmem:[%s3 + $0x8] sm:$0xff]
      %v448 = vld [vmem:[%s3 + $0x10] sm:$0xff]
      %v449 = vld [vmem:[%s3 + $0x18] sm:$0xff]
      %v451 = vsel %vm429, %v440, 0
      %v454 = vsel %vm429, %v441, 0
      %456 = vmatprep.subr.mxu0 0.0
      %457 = vmatpush1.msra.mxu0 %v446
      %458 = vmatprep.subr.mxu0 0.0
      %459 = vmatpush1.msra.mxu0 %v447
      %460 = vmatprep.subr.mxu0 0.0
      %461 = vmatpush1.msra.mxu0 %v448
      %462 = vmatprep.subr.mxu0 0.0
      %463 = vmatpush1.msra.mxu0 %v449
      %464 = vmatprep.subr.mxu0 0.0
      %465 = vmatpush1.msra.mxu0 0.0
      %466 = vmatprep.subr.mxu0 0.0
      %467 = vmatpush1.msra.mxu0 0.0
      %468 = vmatprep.subr.mxu0 0.0
      %469 = vmatpush1.msra.mxu0 0.0
      %470 = vmatprep.subr.mxu0 0.0
      %471 = vmatpush1.msra.mxu0 0.0
      %472 = vmatprep.subr.mxu0 0.0
      %473 = vmatpush1.msra.mxu0 0.0
      %474 = vmatprep.subr.mxu0 0.0
      %475 = vmatpush1.msra.mxu0 0.0
      %476 = vmatprep.subr.mxu0 0.0
      %477 = vmatpush1.msra.mxu0 0.0
      %478 = vmatprep.subr.mxu0 0.0
      %479 = vmatpush1.msra.mxu0 0.0
      %480 = vmatprep.subr.mxu0 0.0
      %481 = vmatpush1.msra.mxu0 0.0
      %482 = vmatprep.subr.mxu0 0.0
      %483 = vmatpush1.msra.mxu0 0.0
      %484 = vmatprep.subr.mxu0 0.0
      %485 = vmatpush1.msra.mxu0 0.0
      %486 = vmatprep.subr.mxu0 0.0
      %487 = vmatpush1.msra.mxu0 0.0
      %488 = vmatprep.subr.mxu0 0.0
      %489 = vmatpush1.msra.mxu0 0.0
      %490 = vmatprep.subr.mxu0 0.0
      %491 = vmatpush1.msra.mxu0 0.0
      %492 = vmatprep.subr.mxu0 0.0
      %493 = vmatpush1.msra.mxu0 0.0
      %494 = vmatprep.subr.mxu0 0.0
      %495 = vmatpush1.msra.mxu0 0.0
      %496 = vmatprep.subr.mxu0 0.0
      %497 = vmatpush1.msra.mxu0 0.0
      %498 = vmatprep.subr.mxu0 0.0
      %499 = vmatpush1.msra.mxu0 0.0
      %500 = vmatprep.subr.mxu0 0.0
      %501 = vmatpush1.msra.mxu0 0.0
      %502 = vmatprep.subr.mxu0 0.0
      %503 = vmatpush1.msra.mxu0 0.0
      %504 = vmatprep.subr.mxu0 0.0
      %505 = vmatpush1.msra.mxu0 0.0
      %506 = vmatprep.subr.mxu0 0.0
      %507 = vmatpush1.msra.mxu0 0.0
      %508 = vmatprep.subr.mxu0 0.0
      %509 = vmatpush1.msra.mxu0 0.0
      %510 = vmatprep.subr.mxu0 0.0
      %511 = vmatpush1.msra.mxu0 0.0
      %512 = vmatprep.subr.mxu0 0.0
      %513 = vmatpush1.msra.mxu0 0.0
      %514 = vmatprep.subr.mxu0 0.0
      %515 = vmatpush1.msra.mxu0 0.0
      %516 = vmatprep.subr.mxu0 0.0
      %517 = vmatpush1.msra.mxu0 0.0
      %518 = vmatprep.subr.mxu0 0.0
      %519 = vmatpush1.msra.mxu0 0.0
      %520 = vmatprep.mubr.f32.mxu0 0.0
      %521 = vmatmul.mubr.f32.gmra.mrb[0].mxu0 %v451
      %v522 = vpop.f32.mrb[0].mxu0
      %v523 = vadd.f32 0.0, %v522
      %v524 = vpop.f32.mrb[0].mxu0
      %525 = vmatprep.mubr.f32.mxu0 0.0
      %526 = vmatmul.mubr.f32.gmra.mrb[0].mxu0 %v454
      %v527 = vpop.f32.mrb[0].mxu0
      %v528 = vadd.f32 0.0, %v527
      %v529 = vpop.f32.mrb[0].mxu0
      %530 = vdwg.mxu0
      %v531 = vld [vmem:[%s4] sm:$0x1]
      %v533 = vlaneseq
      %v534 = vshrl.u32 %v533, 7
      %v535 = vsub.s32 0, %v534
      %v536 = vrot.slane %v531, %v535
      %v538 = vadd.f32 %v444, %v536
      %v539 = vadd.f32 %v445, %v536
      %v540 = vmul.f32 %v523, 2.0
      %v541 = vmul.f32 %v528, 2.0
      %v542 = vsub.f32 %v538, %v540
      %v543 = vsub.f32 %v539, %v541
      %v544 = vmax.f32 %v542, 0.0
      %v545 = vmax.f32 %v543, 0.0
      %v546 = vrsqrt.pop %v544
      %v547 = vmul.f32 %v544, %v546
      %vm548 = vcmp.eq.f32.partialorder %v544, inf
      %v549 = vsel %vm548, %v544, %v547
      %vm550 = vcmp.eq.f32.partialorder %v544, 0.0
      %v551 = vand.u32 %v544, 2147483648
      %v552 = vsel %vm550, %v551, %v549
      %v553 = vrsqrt.pop %v545
      %v554 = vmul.f32 %v545, %v553
      %vm555 = vcmp.eq.f32.partialorder %v545, inf
      %v556 = vsel %vm555, %v545, %v554
      %vm557 = vcmp.eq.f32.partialorder %v545, 0.0
      %v558 = vand.u32 %v545, 2147483648
      %v559 = vsel %vm557, %v558, %v556
      %v560 = vmul.f32 %v552, -100.0
      %v561 = vmul.f32 %v559, -100.0
      %vm562 = vcmask 130048
      %v563 = vsel %vm562, %v560, -inf
      %564 = vmax.xlane.f32.xlu0 %v563
      %v565 = vpop.xlane.xlu0 %564
      %v566 = vsel %vm562, %v561, -inf
      %567 = vmax.xlane.f32.xlu0 %v566
      %v568 = vpop.xlane.xlu0 %567
      %v569 = vsub.f32 %v560, %v565
      %v570 = vsub.f32 %v561, %v568
      %v571 = vmul.f32 %v569, 1.442695
      %v572 = vpow.pop %v571
      %v573 = vmul.f32 %v570, 1.442695
      %v574 = vpow.pop %v573
      %v575 = vsel %vm562, %v572, 0.0
      %576 = vadd.xlane.f32.xlu0 %v575
      %v577 = vpop.xlane.xlu0 %576
      %v578 = vsel %vm562, %v574, 0.0
      %579 = vadd.xlane.f32.xlu0 %v578
      %v580 = vpop.xlane.xlu0 %579
      %v581 = vrcp.pop %v577
      %v582 = vrcp.pop %v580
      %v583 = vmul.f32 %v572, %v581
      %v584 = vmul.f32 %v574, %v582
      %v585 = vld [vmem:[#allocation2] sm:$0xff]
      %v586 = vld [vmem:[#allocation2 + $0x8] sm:$0xff]
      %v587 = vld [vmem:[#allocation2 + $0x10] sm:$0xff]
      %v588 = vld [vmem:[#allocation2 + $0x18] sm:$0xff]
      %589 = vxpose.xlu0.b32.start [1/16] %v440, 128
      %590 = vxpose.xlu0.b32.cont [2/16] %v441, 128
      %591 = vxpose.xlu0.b32.cont [3/16] 0.0, 128
      %592 = vxpose.xlu0.b32.cont [4/16] 0.0, 128
      %593 = vxpose.xlu0.b32.cont [5/16] 0.0, 128
      %594 = vxpose.xlu0.b32.cont [6/16] 0.0, 128
      %595 = vxpose.xlu0.b32.cont [7/16] 0.0, 128
      %596 = vxpose.xlu0.b32.cont [8/16] 0.0, 128
      %597 = vxpose.xlu0.b32.cont [9/16] 0.0, 128
      %598 = vxpose.xlu0.b32.cont [10/16] 0.0, 128
      %599 = vxpose.xlu0.b32.cont [11/16] 0.0, 128
      %600 = vxpose.xlu0.b32.cont [12/16] 0.0, 128
      %601 = vxpose.xlu0.b32.cont [13/16] 0.0, 128
      %602 = vxpose.xlu0.b32.cont [14/16] 0.0, 128
      %603 = vxpose.xlu0.b32.cont [15/16] 0.0, 128
      %604 = vxpose.xlu0.b32.end [16/16] 0.0, 128
      %v605 = vpop.trf.xlu0
      %v606 = vpop.trf.xlu0
      %v607 = vpop.trf.xlu0
      %v608 = vpop.trf.xlu0
      %v609 = vpop.trf.xlu0
      %v610 = vpop.trf.xlu0
      %v611 = vpop.trf.xlu0
      %v612 = vpop.trf.xlu0
      %v613 = vpop.trf.xlu0
      %v614 = vpop.trf.xlu0
      %v615 = vpop.trf.xlu0
      %v616 = vpop.trf.xlu0
      %v617 = vpop.trf.xlu0
      %v618 = vpop.trf.xlu0
      %v619 = vpop.trf.xlu0
      %v620 = vpop.trf.xlu0
      %v622 = vsel %vm562, %v605, 0
      %v625 = vsel %vm562, %v606, 0
      %v628 = vsel %vm562, %v607, 0
      %v631 = vsel %vm562, %v608, 0
      %633 = vmatprep.subr.mxu0 0.0
      %634 = vmatpush1.msra.mxu0 %v583
      %635 = vmatprep.subr.mxu0 0.0
      %636 = vmatpush1.msra.mxu0 %v584
      %637 = vmatprep.subr.mxu0 0.0
      %638 = vmatpush1.msra.mxu0 0.0
      %639 = vmatprep.subr.mxu0 0.0
      %640 = vmatpush1.msra.mxu0 0.0
      %641 = vmatprep.subr.mxu0 0.0
      %642 = vmatpush1.msra.mxu0 0.0
      %643 = vmatprep.subr.mxu0 0.0
      %644 = vmatpush1.msra.mxu0 0.0
      %645 = vmatprep.subr.mxu0 0.0
      %646 = vmatpush1.msra.mxu0 0.0
      %647 = vmatprep.subr.mxu0 0.0
      %648 = vmatpush1.msra.mxu0 0.0
      %649 = vmatprep.subr.mxu0 0.0
      %650 = vmatpush1.msra.mxu0 0.0
      %651 = vmatprep.subr.mxu0 0.0
      %652 = vmatpush1.msra.mxu0 0.0
      %653 = vmatprep.subr.mxu0 0.0
      %654 = vmatpush1.msra.mxu0 0.0
      %655 = vmatprep.subr.mxu0 0.0
      %656 = vmatpush1.msra.mxu0 0.0
      %657 = vmatprep.subr.mxu0 0.0
      %658 = vmatpush1.msra.mxu0 0.0
      %659 = vmatprep.subr.mxu0 0.0
      %660 = vmatpush1.msra.mxu0 0.0
      %661 = vmatprep.subr.mxu0 0.0
      %662 = vmatpush1.msra.mxu0 0.0
      %663 = vmatprep.subr.mxu0 0.0
      %664 = vmatpush1.msra.mxu0 0.0
      %665 = vmatprep.subr.mxu0 0.0
      %666 = vmatpush1.msra.mxu0 0.0
      %667 = vmatprep.subr.mxu0 0.0
      %668 = vmatpush1.msra.mxu0 0.0
      %669 = vmatprep.subr.mxu0 0.0
      %670 = vmatpush1.msra.mxu0 0.0
      %671 = vmatprep.subr.mxu0 0.0
      %672 = vmatpush1.msra.mxu0 0.0
      %673 = vmatprep.subr.mxu0 0.0
      %674 = vmatpush1.msra.mxu0 0.0
      %675 = vmatprep.subr.mxu0 0.0
      %676 = vmatpush1.msra.mxu0 0.0
      %677 = vmatprep.subr.mxu0 0.0
      %678 = vmatpush1.msra.mxu0 0.0
      %679 = vmatprep.subr.mxu0 0.0
      %680 = vmatpush1.msra.mxu0 0.0
      %681 = vmatprep.subr.mxu0 0.0
      %682 = vmatpush1.msra.mxu0 0.0
      %683 = vmatprep.subr.mxu0 0.0
      %684 = vmatpush1.msra.mxu0 0.0
      %685 = vmatprep.subr.mxu0 0.0
      %686 = vmatpush1.msra.mxu0 0.0
      %687 = vmatprep.subr.mxu0 0.0
      %688 = vmatpush1.msra.mxu0 0.0
      %689 = vmatprep.subr.mxu0 0.0
      %690 = vmatpush1.msra.mxu0 0.0
      %691 = vmatprep.subr.mxu0 0.0
      %692 = vmatpush1.msra.mxu0 0.0
      %693 = vmatprep.subr.mxu0 0.0
      %694 = vmatpush1.msra.mxu0 0.0
      %695 = vmatprep.subr.mxu0 0.0
      %696 = vmatpush1.msra.mxu0 0.0
      %697 = vmatprep.mubr.f32.mxu0 0.0
      %698 = vmatmul.mubr.f32.gmra.mrb[0].mxu0 %v622
      %v699 = vpop.f32.mrb[0].mxu0
      %v700 = vadd.f32 0.0, %v699
      %v701 = vpop.f32.mrb[0].mxu0
      %702 = vmatprep.mubr.f32.mxu0 0.0
      %703 = vmatmul.mubr.f32.gmra.mrb[0].mxu0 %v625
      %v704 = vpop.f32.mrb[0].mxu0
      %v705 = vadd.f32 0.0, %v704
      %v706 = vpop.f32.mrb[0].mxu0
      %707 = vmatprep.mubr.f32.mxu0 0.0
      %708 = vmatmul.mubr.f32.gmra.mrb[0].mxu0 %v628
      %v709 = vpop.f32.mrb[0].mxu0
      %v710 = vadd.f32 0.0, %v709
      %v711 = vpop.f32.mrb[0].mxu0
      %712 = vmatprep.mubr.f32.mxu0 0.0
      %713 = vmatmul.mubr.f32.gmra.mrb[0].mxu0 %v631
      %v714 = vpop.f32.mrb[0].mxu0
      %v715 = vadd.f32 0.0, %v714
      %v716 = vpop.f32.mrb[0].mxu0
      %717 = vdwg.mxu0
      %v718 = vadd.f32 %v585, %v700
      %v719 = vadd.f32 %v586, %v705
      %v720 = vadd.f32 %v587, %v710
      %v721 = vadd.f32 %v588, %v715
      %722 = vst.msk [vmem:[#allocation2] sm:$0xff] %vm562, %v718
      %723 = vst.msk [vmem:[#allocation2 + $0x8] sm:$0xff] %vm562, %v719
      %724 = vst.msk [vmem:[#allocation2 + $0x10] sm:$0xff] %vm562, %v720
      %725 = vst.msk [vmem:[#allocation2 + $0x18] sm:$0xff] %vm562, %v721
      %v726 = vld [vmem:[#allocation3] sm:$0x1]
      %v727 = vsel %vm562, %v583, 0.0
      %v728 = vsel %vm562, %v584, 0.0
      %v729 = vadd.f32 %v727, %v728
      %v730 = vrot.slane %v729, 4
      %v731 = vadd.f32 %v729, %v730
      %v732 = vrot.slane %v731, 2
      %v733 = vadd.f32 %v731, %v732
      %v734 = vrot.slane %v733, 1
      %v735 = vadd.f32 %v733, %v734
      %v736 = vadd.f32 %v726, %v735
      %vm737 = vcmask 122880
      %738 = vst.msk [vmem:[#allocation3] sm:$0x1] %vm737, %v736
      // Predicated region
      $region45: #{tpu_custom_call.1} parent=39 // pred_check
        %p739 = pneg %p257
      $region46: #{tpu_custom_call.1} parent=39 // pred_check_branch
        %741 = sbr.rel (%p739) target = $region48
      $region47: #{tpu_custom_call.1} parent=39 // pred_region
        %v742 = vld [vmem:[#allocation2] sm:$0xff]
        %v743 = vld [vmem:[#allocation2 + $0x8] sm:$0xff]
        %v744 = vld [vmem:[#allocation2 + $0x10] sm:$0xff]
        %v745 = vld [vmem:[#allocation2 + $0x18] sm:$0xff]
        %v746 = vld [vmem:[%s3] sm:$0xff]
        %v747 = vld [vmem:[%s3 + $0x8] sm:$0xff]
        %v748 = vld [vmem:[%s3 + $0x10] sm:$0xff]
        %v749 = vld [vmem:[%s3 + $0x18] sm:$0xff]
        %v750 = vld [vmem:[#allocation3] sm:$0x1]
        %v752 = vlaneseq
        %v753 = vshrl.u32 %v752, 7
        %v754 = vsub.s32 0, %v753
        %v755 = vrot.slane %v750, %v754
        %v757 = vmul.f32 %v746, %v755
        %v758 = vmul.f32 %v747, %v755
        %v759 = vmul.f32 %v748, %v755
        %v760 = vmul.f32 %v749, %v755
        %v761 = vsub.f32 %v742, %v757
        %v762 = vsub.f32 %v743, %v758
        %v763 = vsub.f32 %v744, %v759
        %v764 = vsub.f32 %v745, %v760
        %v765 = vmul.f32 %v761, %v761
        %v766 = vmul.f32 %v762, %v762
        %v767 = vmul.f32 %v763, %v763
        %v768 = vmul.f32 %v764, %v764
        %v769 = vsel %vm562, %v765, 0.0
        %770 = vadd.xlane.f32.xlu0 %v769
        %v771 = vpop.xlane.xlu0 %770
        %v772 = vsel %vm562, %v766, 0.0
        %773 = vadd.xlane.f32.xlu0 %v772
        %v774 = vpop.xlane.xlu0 %773
        %v775 = vsel %vm562, %v767, 0.0
        %776 = vadd.xlane.f32.xlu0 %v775
        %v777 = vpop.xlane.xlu0 %776
        %v778 = vsel %vm562, %v768, 0.0
        %779 = vadd.xlane.f32.xlu0 %v778
        %v780 = vpop.xlane.xlu0 %779
        %v781 = vadd.f32 %v771, %v774
        %v782 = vadd.f32 %v781, %v777
        %v783 = vadd.f32 %v782, %v780
        %v784 = vrot.slane %v783, 4
        %v785 = vadd.f32 %v783, %v784
        %v786 = vrot.slane %v785, 2
        %v787 = vadd.f32 %v785, %v786
        %v788 = vrot.slane %v787, 1
        %v789 = vadd.f32 %v787, %v788
        %v790 = vmax.f32 %v789, 1e-24
        %v791 = vrsqrt.pop %v790
        %v792 = vmul.f32 %v761, %v791
        %v793 = vmul.f32 %v762, %v791
        %v794 = vmul.f32 %v763, %v791
        %v795 = vmul.f32 %v764, %v791
        %796 = vst.msk [vmem:[%s255] sm:$0xff] %vm562, %v792
        %797 = vst.msk [vmem:[%s255 + $0x8] sm:$0xff] %vm562, %v793
        %798 = vst.msk [vmem:[%s255 + $0x10] sm:$0xff] %vm562, %v794
        %799 = vst.msk [vmem:[%s255 + $0x18] sm:$0xff] %vm562, %v795
      $region48: #{tpu_custom_call.1} parent=39 // pred_fallthru
        _
      %p800 = scmp.lt.s32.totalorder %s20, 1
      %s801 = scalar_select %p800, %s20, 1
      %s802 = smul.addr %s801, 4
      %s803 = smul.addr %s802, 8
      %s804 = scalar_lea.vmem %s5, %s803
      // Predicated region
      $region49: #{tpu_custom_call.1} parent=39 // pred_check
        %p805 = pneg %p158
      $region50: #{tpu_custom_call.1} parent=39 // pred_check_branch
        %807 = sbr.rel (%p805) target = $region52
      $region51: #{tpu_custom_call.1} parent=39 // pred_region
        _
      $region52: #{tpu_custom_call.1} parent=39 // pred_fallthru
        _
    $region40: #{tpu_custom_call.1} parent=5 // pred_fallthru
      _
    %p808 = scmp.le.s32.totalorder 2, %s11
    // Predicated region
    $region53: #{tpu_custom_call.1} parent=5 // pred_check
      %p809 = pneg %p808
    $region54: #{tpu_custom_call.1} parent=5 // pred_check_branch
      %811 = sbr.rel (%p809) target = $region56
    $region55: #{tpu_custom_call.1} parent=5 // pred_region
      %s812 = ssub.s32 %s11, 2
      // Predicated region
      $region57: #{tpu_custom_call.1} parent=55 // pred_check
        %p813 = pneg %p164
      $region58: #{tpu_custom_call.1} parent=55 // pred_check_branch
        %815 = sbr.rel (%p813) target = $region60
      $region59: #{tpu_custom_call.1} parent=55 // pred_region
        %p816 = scmp.lt.s32.totalorder %s22, 1
        %s817 = scalar_select %p816, %s22, 1
        %s818 = smul.addr %s817, 4
        %s819 = smul.addr %s818, 8
        %s820 = scalar_lea.vmem %s5, %s819
      $region60: #{tpu_custom_call.1} parent=55 // pred_fallthru
        _
    $region56: #{tpu_custom_call.1} parent=5 // pred_fallthru
      _
  $region6: #{tpu_custom_call.1} parent=0 // loop_footer
    %s15 = sadd.s32 1, %s11
  $region7: #{tpu_custom_call.1} parent=0 // loop_footer_branch
    %10 = sbr.rel target = $region3
  $region8: #{tpu_custom_call.1} parent=0 // loop_exit
    _

</llo_original>
